<compile_context>
chip_gen: v7x
topology: tpu7x:2x2x1
jax: 0.10.0
libtpu: 0.0.40
codegen_flags: <defaults>
</compile_context>

<pallas_src>
import functools

import jax
import jax.numpy as jnp
from jax import lax
from jax.experimental import pallas as pl
from jax.experimental.pallas import tpu as pltpu


def _ctrnn_kernel(wt_ref, b_ref, out_ref, *, alpha, lt, hidden_size, out_width):
    """Runs the whole lt-step recurrence in a single (grid-less) invocation.

    wt_ref : (H, H)          = W.T  (step is  h(1,H) @ wt(H,H) on the MXU)
    b_ref  : (1, H)
    out_ref: (1, out_width)  lane-dense per-step hiddens; step i occupies
                             lanes [i*H, (i+1)*H); lanes >= lt*H are zero pad.
    """
    w = wt_ref[...]                      # hoisted weight load (4 vregs @ H=32)
    b = b_ref[...]                       # hoisted bias load   (1 vreg)
    alpha_f = jnp.float32(alpha)
    one_minus_alpha_f = jnp.float32(1.0 - alpha)

    h = jnp.zeros((1, hidden_size), dtype=jnp.float32)
    rows = []
    # lt is a static Python int; the recurrence is strictly serial, so a full
    # static unroll keeps all indices static and exposes the chain to the
    # scheduler.
    for _ in range(lt):
        if alpha != 1.0:
            # Depends only on h: ready before the matmul finishes, so it runs
            # in otherwise-idle VALU slots off the post-tanh critical path.
            h_leak = one_minus_alpha_f * h
        # Single-pass bf16 MXU matmul with f32 accumulate (do NOT let this
        # lower as a 3-pass f32 decomposition on the serial chain).
        pre = jnp.dot(
            h,
            w,
            preferred_element_type=jnp.float32,
            precision=lax.Precision.DEFAULT,
        )
        h_new = jnp.tanh(pre + b)
        if alpha == 1.0:
            h = h_new
        else:
            # Post-tanh dependent chain: one mul + one add.
            h = h_leak + alpha_f * h_new
        rows.append(h)

    pad = out_width - lt * hidden_size
    if pad > 0:
        rows.append(jnp.zeros((1, pad), jnp.float32))
    # Epilogue: one lane-dense (multiple-of-128 wide) unmasked store instead
    # of lt masked sub-lane stores.
    out_ref[...] = jnp.concatenate(rows, axis=1)


def _ctrnn2_forward_impl(weight, bias, *, hidden_size, output_size, dt=None):
    """Mirrors CTRNN2.forward (hidden=None path).  Intended to run under jit,
    so the transpose/reshape/cast/slice below are fused layout ops, not
    standalone dispatches."""
    tau = 1.0
    alpha = 1.0 if dt is None else dt / tau
    lt = int(output_size / hidden_size)   # matches torch int(a / b)
    H = hidden_size
    assert lt >= 1, "lt must be >= 1 for torch.stack to be well-defined"

    # Pad output width to the next multiple of 128 lanes (unmasked vst).
    out_width = max(128, ((lt * H + 127) // 128) * 128)

    wt = weight.T.astype(jnp.float32)             # (H, H); fused under jit
    b = bias.astype(jnp.float32).reshape(1, H)    # (1, H); fused under jit

    kernel = functools.partial(
        _ctrnn_kernel, alpha=float(alpha), lt=lt, hidden_size=H,
        out_width=out_width,
    )

    out_flat = pl.pallas_call(
        kernel,
        out_shape=jax.ShapeDtypeStruct((1, out_width), jnp.float32),
        in_specs=[
            pl.BlockSpec(memory_space=pltpu.MemorySpace.VMEM),
            pl.BlockSpec(memory_space=pltpu.MemorySpace.VMEM),
        ],
        out_specs=pl.BlockSpec(memory_space=pltpu.MemorySpace.VMEM),
    )(wt, b)

    out = out_flat[0, :lt * H].reshape(lt, H)   # time-major, = torch.stack(dim=0)
    hidden = out[lt - 1]                        # final hidden is the last row
    return out, hidden


# Static shape/step-count/alpha parameters; everything above traces into a
# single executable (no per-op dispatch).
ctrnn2_forward = jax.jit(
    _ctrnn2_forward_impl, static_argnames=("hidden_size", "output_size", "dt")
)


def _reference_forward(weight, bias, *, hidden_size, output_size, dt=None):
    """Pure-JAX reference matching the PyTorch module, for verification."""
    tau = 1.0
    alpha = 1.0 if dt is None else dt / tau
    lt = int(output_size / hidden_size)
    h = jnp.zeros((hidden_size,), jnp.float32)
    outs = []
    for _ in range(lt):
        h_new = jnp.tanh(h @ weight.T + bias)
        h = h * (1.0 - alpha) + h_new * alpha
        outs.append(h)
    return jnp.stack(outs, axis=0), h


if __name__ == "__main__":
    # Small shapes consistent with the module: hidden=32, output_size=128 -> lt=4.
    hidden_size = 32
    output_size = 128
    dt_val = 0.1

    key = jax.random.PRNGKey(0)
    kw, kb, kx = jax.random.split(key, 3)

    # Deterministic nn.Linear-style init: U(-1/sqrt(H), 1/sqrt(H)).
    bound = 1.0 / (hidden_size ** 0.5)
    weight = jax.random.uniform(
        kw, (hidden_size, hidden_size), jnp.float32, -bound, bound
    )
    bias = jax.random.uniform(kb, (hidden_size,), jnp.float32, -bound, bound)

    # `input` is unused by the forward math (only determines device in torch).
    x = jax.random.normal(kx, (2, hidden_size), jnp.float32)  # ignored

    out, h_final = ctrnn2_forward(
        weight, bias, hidden_size=hidden_size, output_size=output_size, dt=dt_val
    )
    out = jax.block_until_ready(out)
    h_final = jax.block_until_ready(h_final)

    ref_out, ref_h = _reference_forward(
        weight, bias, hidden_size=hidden_size, output_size=output_size, dt=dt_val
    )
    assert out.shape == (output_size // hidden_size, hidden_size)
    assert h_final.shape == (hidden_size,)
    # Kernel and reference both use default (single-pass bf16) MXU precision;
    # modest tolerance covers any lowering-level rounding differences.
    assert jnp.allclose(out, ref_out, atol=1e-4, rtol=1e-4)
    assert jnp.allclose(h_final, ref_h, atol=1e-4, rtol=1e-4)

    print("KERNEL_OK")
</pallas_src>

<mosaic_0001>
module attributes {stable_mosaic.version = 11 : i64} {
  func.func @_ctrnn_kernel(%arg0: memref<32x32xf32, #tpu.memory_space<vmem>>, %arg1: memref<1x32xf32, #tpu.memory_space<vmem>>, %arg2: memref<1x128xf32, #tpu.memory_space<vmem>>) attributes {dimension_semantics = [], scalar_prefetch = 0 : i64, scratch_operands = 0 : i64, tpu.core_type = #tpu.core_type<tc>} {
    %c0 = arith.constant 0 : index
    %c0_0 = arith.constant 0 : index
    %0 = vector.load %arg0[%c0, %c0_0] : memref<32x32xf32, #tpu.memory_space<vmem>>, vector<32x32xf32>
    %c0_1 = arith.constant 0 : index
    %c0_2 = arith.constant 0 : index
    %1 = vector.load %arg1[%c0_1, %c0_2] : memref<1x32xf32, #tpu.memory_space<vmem>>, vector<1x32xf32>
    %cst = arith.constant 0.000000e+00 : f32
    %2 = vector.broadcast %cst : f32 to vector<1x32xf32>
    %cst_3 = arith.constant 0.899999976 : f32
    %3 = vector.broadcast %cst_3 : f32 to vector<1x32xf32>
    %4 = arith.mulf %3, %2 : vector<1x32xf32>
    %cst_4 = arith.constant dense<0.000000e+00> : vector<1x32xf32>
    %5 = tpu.matmul %2, %0, %cst_4 {dimension_numbers = #tpu.dot_dimension_numbers<[1], [0], [0], [1], [0, 0, 1, 1], [], []>} : vector<1x32xf32>, vector<32x32xf32>, vector<1x32xf32> -> vector<1x32xf32>
    %6 = arith.addf %5, %1 : vector<1x32xf32>
    %7 = math.tanh %6 : vector<1x32xf32>
    %cst_5 = arith.constant 1.000000e-01 : f32
    %8 = vector.broadcast %cst_5 : f32 to vector<1x32xf32>
    %9 = arith.mulf %8, %7 : vector<1x32xf32>
    %10 = arith.addf %4, %9 : vector<1x32xf32>
    %cst_6 = arith.constant 0.899999976 : f32
    %11 = vector.broadcast %cst_6 : f32 to vector<1x32xf32>
    %12 = arith.mulf %11, %10 : vector<1x32xf32>
    %cst_7 = arith.constant dense<0.000000e+00> : vector<1x32xf32>
    %13 = tpu.matmul %10, %0, %cst_7 {dimension_numbers = #tpu.dot_dimension_numbers<[1], [0], [0], [1], [0, 0, 1, 1], [], []>} : vector<1x32xf32>, vector<32x32xf32>, vector<1x32xf32> -> vector<1x32xf32>
    %14 = arith.addf %13, %1 : vector<1x32xf32>
    %15 = math.tanh %14 : vector<1x32xf32>
    %cst_8 = arith.constant 1.000000e-01 : f32
    %16 = vector.broadcast %cst_8 : f32 to vector<1x32xf32>
    %17 = arith.mulf %16, %15 : vector<1x32xf32>
    %18 = arith.addf %12, %17 : vector<1x32xf32>
    %cst_9 = arith.constant 0.899999976 : f32
    %19 = vector.broadcast %cst_9 : f32 to vector<1x32xf32>
    %20 = arith.mulf %19, %18 : vector<1x32xf32>
    %cst_10 = arith.constant dense<0.000000e+00> : vector<1x32xf32>
    %21 = tpu.matmul %18, %0, %cst_10 {dimension_numbers = #tpu.dot_dimension_numbers<[1], [0], [0], [1], [0, 0, 1, 1], [], []>} : vector<1x32xf32>, vector<32x32xf32>, vector<1x32xf32> -> vector<1x32xf32>
    %22 = arith.addf %21, %1 : vector<1x32xf32>
    %23 = math.tanh %22 : vector<1x32xf32>
    %cst_11 = arith.constant 1.000000e-01 : f32
    %24 = vector.broadcast %cst_11 : f32 to vector<1x32xf32>
    %25 = arith.mulf %24, %23 : vector<1x32xf32>
    %26 = arith.addf %20, %25 : vector<1x32xf32>
    %cst_12 = arith.constant 0.899999976 : f32
    %27 = vector.broadcast %cst_12 : f32 to vector<1x32xf32>
    %28 = arith.mulf %27, %26 : vector<1x32xf32>
    %cst_13 = arith.constant dense<0.000000e+00> : vector<1x32xf32>
    %29 = tpu.matmul %26, %0, %cst_13 {dimension_numbers = #tpu.dot_dimension_numbers<[1], [0], [0], [1], [0, 0, 1, 1], [], []>} : vector<1x32xf32>, vector<32x32xf32>, vector<1x32xf32> -> vector<1x32xf32>
    %30 = arith.addf %29, %1 : vector<1x32xf32>
    %31 = math.tanh %30 : vector<1x32xf32>
    %cst_14 = arith.constant 1.000000e-01 : f32
    %32 = vector.broadcast %cst_14 : f32 to vector<1x32xf32>
    %33 = arith.mulf %32, %31 : vector<1x32xf32>
    %34 = arith.addf %28, %33 : vector<1x32xf32>
    %35 = tpu.concatenate %10, %18, %26, %34 in 1 : vector<1x32xf32>, vector<1x32xf32>, vector<1x32xf32>, vector<1x32xf32> -> vector<1x128xf32>
    %c0_15 = arith.constant 0 : index
    %c0_16 = arith.constant 0 : index
    %36 = vector.load %arg2[%c0_15, %c0_16] : memref<1x128xf32, #tpu.memory_space<vmem>>, vector<1x128xf32>
    tpu.vector_store %arg2[%c0_15, %c0_16], %35 {strides = array<i32>} : memref<1x128xf32, #tpu.memory_space<vmem>>, vector<1x128xf32>,
    return
  }
}

</mosaic_0001>

<llo_original>
// kernel: squeeze.2
$region0: #{squeeze.2}
  %s0 = inlined_call_operand.vmem [shape: f32[128], index: 0, kind: input, shape index: {}]
  %s1 = inlined_call_operand.vmem [shape: f32[4,32], index: 1, kind: output, shape index: {}]
  $region1: #{squeeze.2} parent=0
    #allocation0 [shape = 'u8[4096]{0}', space=vmem, size = 0x1000, scoped, tag = 'scoped mem for output reshape']
    #allocation1 [shape = 'u8[4096]{0}', space=vmem, size = 0x1000, scoped, tag = 'scoped mem for input reshape']
    %s3 = sshllo.u32 0, 1
    %v4 = vld [vmem:[%s0] sm:%s3]
    %5 = vst [vmem:[#allocation1] sm:%s3] %v4
    %v6 = vld [vmem:[#allocation1] sm:$0x1]
    %vm7 = vcmask 261120
    %8 = vst.msk [vmem:[#allocation0] sm:$0x1] %vm7, %v6
    %v9 = vld [vmem:[#allocation1] sm:$0x1]
    %10 = vrot.lane.b32.xlu0 %v9, 96
    %v11 = vpop.permute.xlu0 %10
    %vm12 = vcmask 261120
    %s13 = scalar_lea.vmem [#allocation0], 1
    %14 = vst.msk [vmem:[%s13] sm:$0x1] %vm12, %v11
    %v15 = vld [vmem:[#allocation1] sm:$0x1]
    %16 = vrot.lane.b32.xlu0 %v15, 64
    %v17 = vpop.permute.xlu0 %16
    %vm18 = vcmask 261120
    %s19 = scalar_lea.vmem [#allocation0], 2
    %20 = vst.msk [vmem:[%s19] sm:$0x1] %vm18, %v17
    %v21 = vld [vmem:[#allocation1] sm:$0x1]
    %22 = vrot.lane.b32.xlu0 %v21, 32
    %v23 = vpop.permute.xlu0 %22
    %vm24 = vcmask 261120
    %s25 = scalar_lea.vmem [#allocation0], 3
    %26 = vst.msk [vmem:[%s25] sm:$0x1] %vm24, %v23
    %s28 = sshllo.u32 0, 4
    %v30 = vld [vmem:[#allocation0] sm:%s28]
    %s31 = sshllo.u32 0, 4
    %32 = vst [vmem:[%s1] sm:%s31] %v30

// kernel: _ctrnn2_forward_impl.1
$region0: #{_ctrnn2_forward_impl.1}
  #allocation0 [shape = 'u32[]', space=smem, size = 0x4, offset = 0x4, fixed_abs, tag = 'smem constant byte address 0x4 - core index']
  #allocation1 [shape = 'u32[144,128]{1,0:T(1,128)}', space=vmem, size = 0x12000, scoped, tag = 'internal scratch']
  %s0 = inlined_call_operand.vmem [shape: f32[32,32], index: 0, kind: input, shape index: {}]
  %s1 = inlined_call_operand.vmem [shape: f32[1,32], index: 1, kind: input, shape index: {}]
  %s2 = inlined_call_operand.vmem [shape: f32[1,128], index: 2, kind: output, shape index: {}]
  %s3 = sld [smem:[#allocation0]]
  $region18: #{_ctrnn2_forward_impl.1} parent=0
    _
  %s5 = ssub.s32 1, %s3
  %s6 = scalar_select 0, %s5, %s3
  // Predicated region
  $region2: #{_ctrnn2_forward_impl.1} parent=0 // pred_check
    _
  $region3: #{_ctrnn2_forward_impl.1} parent=0 // pred_check_branch
    %8 = sbr.rel (0) target = $region5
  $region4: #{_ctrnn2_forward_impl.1} parent=0 // pred_region
    _
  $region5: #{_ctrnn2_forward_impl.1} parent=0 // pred_fallthru
    _
  // Predicated region
  $region6: #{_ctrnn2_forward_impl.1} parent=0 // pred_check
    _
  $region7: #{_ctrnn2_forward_impl.1} parent=0 // pred_check_branch
    %10 = sbr.rel (0) target = $region9
  $region8: #{_ctrnn2_forward_impl.1} parent=0 // pred_region
    _
  $region9: #{_ctrnn2_forward_impl.1} parent=0 // pred_fallthru
    _
  %v11 = vld [vmem:[%s0] sm:$0xff]
  %v12 = vld [vmem:[%s0 + $0x8] sm:$0xff]
  %v13 = vld [vmem:[%s0 + $0x10] sm:$0xff]
  %v14 = vld [vmem:[%s0 + $0x18] sm:$0xff]
  %v15 = vld [vmem:[%s1] sm:$0x1]
  %vm16 = vcmask 261120
  %v18 = vsel %vm16, 0.0, 0
  %20 = vmatprep.subr.mxu0 0.0
  %21 = vmatpush1.msra.mxu0 %v11
  %22 = vmatprep.subr.mxu0 0.0
  %23 = vmatpush1.msra.mxu0 %v12
  %24 = vmatprep.subr.mxu0 0.0
  %25 = vmatpush1.msra.mxu0 %v13
  %26 = vmatprep.subr.mxu0 0.0
  %27 = vmatpush1.msra.mxu0 %v14
  %28 = vmatprep.subr.mxu0 0.0
  %29 = vmatpush1.msra.mxu0 0.0
  %30 = vmatprep.subr.mxu0 0.0
  %31 = vmatpush1.msra.mxu0 0.0
  %32 = vmatprep.subr.mxu0 0.0
  %33 = vmatpush1.msra.mxu0 0.0
  %34 = vmatprep.subr.mxu0 0.0
  %35 = vmatpush1.msra.mxu0 0.0
  %36 = vmatprep.subr.mxu0 0.0
  %37 = vmatpush1.msra.mxu0 0.0
  %38 = vmatprep.subr.mxu0 0.0
  %39 = vmatpush1.msra.mxu0 0.0
  %40 = vmatprep.subr.mxu0 0.0
  %41 = vmatpush1.msra.mxu0 0.0
  %42 = vmatprep.subr.mxu0 0.0
  %43 = vmatpush1.msra.mxu0 0.0
  %44 = vmatprep.subr.mxu0 0.0
  %45 = vmatpush1.msra.mxu0 0.0
  %46 = vmatprep.subr.mxu0 0.0
  %47 = vmatpush1.msra.mxu0 0.0
  %48 = vmatprep.subr.mxu0 0.0
  %49 = vmatpush1.msra.mxu0 0.0
  %50 = vmatprep.subr.mxu0 0.0
  %51 = vmatpush1.msra.mxu0 0.0
  %52 = vmatprep.subr.mxu0 0.0
  %53 = vmatpush1.msra.mxu0 0.0
  %54 = vmatprep.subr.mxu0 0.0
  %55 = vmatpush1.msra.mxu0 0.0
  %56 = vmatprep.subr.mxu0 0.0
  %57 = vmatpush1.msra.mxu0 0.0
  %58 = vmatprep.subr.mxu0 0.0
  %59 = vmatpush1.msra.mxu0 0.0
  %60 = vmatprep.subr.mxu0 0.0
  %61 = vmatpush1.msra.mxu0 0.0
  %62 = vmatprep.subr.mxu0 0.0
  %63 = vmatpush1.msra.mxu0 0.0
  %64 = vmatprep.subr.mxu0 0.0
  %65 = vmatpush1.msra.mxu0 0.0
  %66 = vmatprep.subr.mxu0 0.0
  %67 = vmatpush1.msra.mxu0 0.0
  %68 = vmatprep.subr.mxu0 0.0
  %69 = vmatpush1.msra.mxu0 0.0
  %70 = vmatprep.subr.mxu0 0.0
  %71 = vmatpush1.msra.mxu0 0.0
  %72 = vmatprep.subr.mxu0 0.0
  %73 = vmatpush1.msra.mxu0 0.0
  %74 = vmatprep.subr.mxu0 0.0
  %75 = vmatpush1.msra.mxu0 0.0
  %76 = vmatprep.subr.mxu0 0.0
  %77 = vmatpush1.msra.mxu0 0.0
  %78 = vmatprep.subr.mxu0 0.0
  %79 = vmatpush1.msra.mxu0 0.0
  %80 = vmatprep.subr.mxu0 0.0
  %81 = vmatpush1.msra.mxu0 0.0
  %82 = vmatprep.subr.mxu0 0.0
  %83 = vmatpush1.msra.mxu0 0.0
  %84 = vmatprep.mubr.f32.mxu0 0.0
  %85 = vmatmul.mubr.f32.gmra.mrb[0].mxu0 %v18
  %v86 = vpop.f32.mrb[0].mxu0
  %v87 = vadd.f32 %v15, %v86
  %v88 = vpop.f32.mrb[0].mxu0
  %89 = vdwg.mxu0
  %v90 = vtanh.pop %v87
  %v91 = vmul.f32 %v90, 0.1
  %v92 = vadd.f32 %v91, 0.0
  %v93 = vmul.f32 %v92, 0.9
  %v95 = vsel %vm16, %v92, 0
  %97 = vmatprep.subr.mxu0 0.0
  %98 = vmatpush1.msra.mxu0 %v11
  %99 = vmatprep.subr.mxu0 0.0
  %100 = vmatpush1.msra.mxu0 %v12
  %101 = vmatprep.subr.mxu0 0.0
  %102 = vmatpush1.msra.mxu0 %v13
  %103 = vmatprep.subr.mxu0 0.0
  %104 = vmatpush1.msra.mxu0 %v14
  %105 = vmatprep.subr.mxu0 0.0
  %106 = vmatpush1.msra.mxu0 0.0
  %107 = vmatprep.subr.mxu0 0.0
  %108 = vmatpush1.msra.mxu0 0.0
  %109 = vmatprep.subr.mxu0 0.0
  %110 = vmatpush1.msra.mxu0 0.0
  %111 = vmatprep.subr.mxu0 0.0
  %112 = vmatpush1.msra.mxu0 0.0
  %113 = vmatprep.subr.mxu0 0.0
  %114 = vmatpush1.msra.mxu0 0.0
  %115 = vmatprep.subr.mxu0 0.0
  %116 = vmatpush1.msra.mxu0 0.0
  %117 = vmatprep.subr.mxu0 0.0
  %118 = vmatpush1.msra.mxu0 0.0
  %119 = vmatprep.subr.mxu0 0.0
  %120 = vmatpush1.msra.mxu0 0.0
  %121 = vmatprep.subr.mxu0 0.0
  %122 = vmatpush1.msra.mxu0 0.0
  %123 = vmatprep.subr.mxu0 0.0
  %124 = vmatpush1.msra.mxu0 0.0
  %125 = vmatprep.subr.mxu0 0.0
  %126 = vmatpush1.msra.mxu0 0.0
  %127 = vmatprep.subr.mxu0 0.0
  %128 = vmatpush1.msra.mxu0 0.0
  %129 = vmatprep.subr.mxu0 0.0
  %130 = vmatpush1.msra.mxu0 0.0
  %131 = vmatprep.subr.mxu0 0.0
  %132 = vmatpush1.msra.mxu0 0.0
  %133 = vmatprep.subr.mxu0 0.0
  %134 = vmatpush1.msra.mxu0 0.0
  %135 = vmatprep.subr.mxu0 0.0
  %136 = vmatpush1.msra.mxu0 0.0
  %137 = vmatprep.subr.mxu0 0.0
  %138 = vmatpush1.msra.mxu0 0.0
  %139 = vmatprep.subr.mxu0 0.0
  %140 = vmatpush1.msra.mxu0 0.0
  %141 = vmatprep.subr.mxu0 0.0
  %142 = vmatpush1.msra.mxu0 0.0
  %143 = vmatprep.subr.mxu0 0.0
  %144 = vmatpush1.msra.mxu0 0.0
  %145 = vmatprep.subr.mxu0 0.0
  %146 = vmatpush1.msra.mxu0 0.0
  %147 = vmatprep.subr.mxu0 0.0
  %148 = vmatpush1.msra.mxu0 0.0
  %149 = vmatprep.subr.mxu0 0.0
  %150 = vmatpush1.msra.mxu0 0.0
  %151 = vmatprep.subr.mxu0 0.0
  %152 = vmatpush1.msra.mxu0 0.0
  %153 = vmatprep.subr.mxu0 0.0
  %154 = vmatpush1.msra.mxu0 0.0
  %155 = vmatprep.subr.mxu0 0.0
  %156 = vmatpush1.msra.mxu0 0.0
  %157 = vmatprep.subr.mxu0 0.0
  %158 = vmatpush1.msra.mxu0 0.0
  %159 = vmatprep.subr.mxu0 0.0
  %160 = vmatpush1.msra.mxu0 0.0
  %161 = vmatprep.mubr.f32.mxu0 0.0
  %162 = vmatmul.mubr.f32.gmra.mrb[0].mxu0 %v95
  %v163 = vpop.f32.mrb[0].mxu0
  %v164 = vadd.f32 %v15, %v163
  %v165 = vpop.f32.mrb[0].mxu0
  %166 = vdwg.mxu0
  %v167 = vtanh.pop %v164
  %v168 = vmul.f32 %v167, 0.1
  %v169 = vadd.f32 %v93, %v168
  %v170 = vmul.f32 %v169, 0.9
  %v172 = vsel %vm16, %v169, 0
  %174 = vmatprep.subr.mxu0 0.0
  %175 = vmatpush1.msra.mxu0 %v11
  %176 = vmatprep.subr.mxu0 0.0
  %177 = vmatpush1.msra.mxu0 %v12
  %178 = vmatprep.subr.mxu0 0.0
  %179 = vmatpush1.msra.mxu0 %v13
  %180 = vmatprep.subr.mxu0 0.0
  %181 = vmatpush1.msra.mxu0 %v14
  %182 = vmatprep.subr.mxu0 0.0
  %183 = vmatpush1.msra.mxu0 0.0
  %184 = vmatprep.subr.mxu0 0.0
  %185 = vmatpush1.msra.mxu0 0.0
  %186 = vmatprep.subr.mxu0 0.0
  %187 = vmatpush1.msra.mxu0 0.0
  %188 = vmatprep.subr.mxu0 0.0
  %189 = vmatpush1.msra.mxu0 0.0
  %190 = vmatprep.subr.mxu0 0.0
  %191 = vmatpush1.msra.mxu0 0.0
  %192 = vmatprep.subr.mxu0 0.0
  %193 = vmatpush1.msra.mxu0 0.0
  %194 = vmatprep.subr.mxu0 0.0
  %195 = vmatpush1.msra.mxu0 0.0
  %196 = vmatprep.subr.mxu0 0.0
  %197 = vmatpush1.msra.mxu0 0.0
  %198 = vmatprep.subr.mxu0 0.0
  %199 = vmatpush1.msra.mxu0 0.0
  %200 = vmatprep.subr.mxu0 0.0
  %201 = vmatpush1.msra.mxu0 0.0
  %202 = vmatprep.subr.mxu0 0.0
  %203 = vmatpush1.msra.mxu0 0.0
  %204 = vmatprep.subr.mxu0 0.0
  %205 = vmatpush1.msra.mxu0 0.0
  %206 = vmatprep.subr.mxu0 0.0
  %207 = vmatpush1.msra.mxu0 0.0
  %208 = vmatprep.subr.mxu0 0.0
  %209 = vmatpush1.msra.mxu0 0.0
  %210 = vmatprep.subr.mxu0 0.0
  %211 = vmatpush1.msra.mxu0 0.0
  %212 = vmatprep.subr.mxu0 0.0
  %213 = vmatpush1.msra.mxu0 0.0
  %214 = vmatprep.subr.mxu0 0.0
  %215 = vmatpush1.msra.mxu0 0.0
  %216 = vmatprep.subr.mxu0 0.0
  %217 = vmatpush1.msra.mxu0 0.0
  %218 = vmatprep.subr.mxu0 0.0
  %219 = vmatpush1.msra.mxu0 0.0
  %220 = vmatprep.subr.mxu0 0.0
  %221 = vmatpush1.msra.mxu0 0.0
  %222 = vmatprep.subr.mxu0 0.0
  %223 = vmatpush1.msra.mxu0 0.0
  %224 = vmatprep.subr.mxu0 0.0
  %225 = vmatpush1.msra.mxu0 0.0
  %226 = vmatprep.subr.mxu0 0.0
  %227 = vmatpush1.msra.mxu0 0.0
  %228 = vmatprep.subr.mxu0 0.0
  %229 = vmatpush1.msra.mxu0 0.0
  %230 = vmatprep.subr.mxu0 0.0
  %231 = vmatpush1.msra.mxu0 0.0
  %232 = vmatprep.subr.mxu0 0.0
  %233 = vmatpush1.msra.mxu0 0.0
  %234 = vmatprep.subr.mxu0 0.0
  %235 = vmatpush1.msra.mxu0 0.0
  %236 = vmatprep.subr.mxu0 0.0
  %237 = vmatpush1.msra.mxu0 0.0
  %238 = vmatprep.mubr.f32.mxu0 0.0
  %239 = vmatmul.mubr.f32.gmra.mrb[0].mxu0 %v172
  %v240 = vpop.f32.mrb[0].mxu0
  %v241 = vadd.f32 %v15, %v240
  %v242 = vpop.f32.mrb[0].mxu0
  %243 = vdwg.mxu0
  %v244 = vtanh.pop %v241
  %v245 = vmul.f32 %v244, 0.1
  %v246 = vadd.f32 %v170, %v245
  %v247 = vmul.f32 %v246, 0.9
  %v249 = vsel %vm16, %v246, 0
  %251 = vmatprep.subr.mxu0 0.0
  %252 = vmatpush1.msra.mxu0 %v11
  %253 = vmatprep.subr.mxu0 0.0
  %254 = vmatpush1.msra.mxu0 %v12
  %255 = vmatprep.subr.mxu0 0.0
  %256 = vmatpush1.msra.mxu0 %v13
  %257 = vmatprep.subr.mxu0 0.0
  %258 = vmatpush1.msra.mxu0 %v14
  %259 = vmatprep.subr.mxu0 0.0
  %260 = vmatpush1.msra.mxu0 0.0
  %261 = vmatprep.subr.mxu0 0.0
  %262 = vmatpush1.msra.mxu0 0.0
  %263 = vmatprep.subr.mxu0 0.0
  %264 = vmatpush1.msra.mxu0 0.0
  %265 = vmatprep.subr.mxu0 0.0
  %266 = vmatpush1.msra.mxu0 0.0
  %267 = vmatprep.subr.mxu0 0.0
  %268 = vmatpush1.msra.mxu0 0.0
  %269 = vmatprep.subr.mxu0 0.0
  %270 = vmatpush1.msra.mxu0 0.0
  %271 = vmatprep.subr.mxu0 0.0
  %272 = vmatpush1.msra.mxu0 0.0
  %273 = vmatprep.subr.mxu0 0.0
  %274 = vmatpush1.msra.mxu0 0.0
  %275 = vmatprep.subr.mxu0 0.0
  %276 = vmatpush1.msra.mxu0 0.0
  %277 = vmatprep.subr.mxu0 0.0
  %278 = vmatpush1.msra.mxu0 0.0
  %279 = vmatprep.subr.mxu0 0.0
  %280 = vmatpush1.msra.mxu0 0.0
  %281 = vmatprep.subr.mxu0 0.0
  %282 = vmatpush1.msra.mxu0 0.0
  %283 = vmatprep.subr.mxu0 0.0
  %284 = vmatpush1.msra.mxu0 0.0
  %285 = vmatprep.subr.mxu0 0.0
  %286 = vmatpush1.msra.mxu0 0.0
  %287 = vmatprep.subr.mxu0 0.0
  %288 = vmatpush1.msra.mxu0 0.0
  %289 = vmatprep.subr.mxu0 0.0
  %290 = vmatpush1.msra.mxu0 0.0
  %291 = vmatprep.subr.mxu0 0.0
  %292 = vmatpush1.msra.mxu0 0.0
  %293 = vmatprep.subr.mxu0 0.0
  %294 = vmatpush1.msra.mxu0 0.0
  %295 = vmatprep.subr.mxu0 0.0
  %296 = vmatpush1.msra.mxu0 0.0
  %297 = vmatprep.subr.mxu0 0.0
  %298 = vmatpush1.msra.mxu0 0.0
  %299 = vmatprep.subr.mxu0 0.0
  %300 = vmatpush1.msra.mxu0 0.0
  %301 = vmatprep.subr.mxu0 0.0
  %302 = vmatpush1.msra.mxu0 0.0
  %303 = vmatprep.subr.mxu0 0.0
  %304 = vmatpush1.msra.mxu0 0.0
  %305 = vmatprep.subr.mxu0 0.0
  %306 = vmatpush1.msra.mxu0 0.0
  %307 = vmatprep.subr.mxu0 0.0
  %308 = vmatpush1.msra.mxu0 0.0
  %309 = vmatprep.subr.mxu0 0.0
  %310 = vmatpush1.msra.mxu0 0.0
  %311 = vmatprep.subr.mxu0 0.0
  %312 = vmatpush1.msra.mxu0 0.0
  %313 = vmatprep.subr.mxu0 0.0
  %314 = vmatpush1.msra.mxu0 0.0
  %315 = vmatprep.mubr.f32.mxu0 0.0
  %316 = vmatmul.mubr.f32.gmra.mrb[0].mxu0 %v249
  %v317 = vpop.f32.mrb[0].mxu0
  %v318 = vadd.f32 %v15, %v317
  %v319 = vpop.f32.mrb[0].mxu0
  %320 = vdwg.mxu0
  %v321 = vtanh.pop %v318
  %v322 = vmul.f32 %v321, 0.1
  %v323 = vadd.f32 %v247, %v322
  %324 = vrot.lane.b32.xlu0 %v169, 32
  %v325 = vpop.permute.xlu0 %324
  %327 = vrot.lane.b32.xlu0 %v246, 64
  %v328 = vpop.permute.xlu0 %327
  %331 = vrot.lane.b32.xlu0 %v323, 96
  %v332 = vpop.permute.xlu0 %331
  %v334 = vsel %vm16, %v92, %v325
  %vm335 = vcmask 523264
  %v336 = vsel %vm335, %v334, %v328
  %vm337 = vcmask 785408
  %v338 = vsel %vm337, %v336, %v332
  %339 = vst [vmem:[%s2] sm:$0x1] %v338
  // Predicated region
  $region10: #{_ctrnn2_forward_impl.1} parent=0 // pred_check
    _
  $region11: #{_ctrnn2_forward_impl.1} parent=0 // pred_check_branch
    %341 = sbr.rel (0) target = $region13
  $region12: #{_ctrnn2_forward_impl.1} parent=0 // pred_region
    _
  $region13: #{_ctrnn2_forward_impl.1} parent=0 // pred_fallthru
    _
  // Predicated region
  $region14: #{_ctrnn2_forward_impl.1} parent=0 // pred_check
    _
  $region15: #{_ctrnn2_forward_impl.1} parent=0 // pred_check_branch
    %343 = sbr.rel (0) target = $region17
  $region16: #{_ctrnn2_forward_impl.1} parent=0 // pred_region
    _
  $region17: #{_ctrnn2_forward_impl.1} parent=0 // pred_fallthru
    _

</llo_original>
